<compile_context>
chip_gen: v7x
topology: tpu7x:2x2x1
jax: 0.10.0
libtpu: 0.0.40
codegen_flags: <defaults>
</compile_context>

<pallas_src>
import math

import jax
import jax.numpy as jnp
from jax.experimental import pallas as pl
from jax.experimental.pallas import tpu as pltpu


_SQRT_2_OVER_PI = 0.7978845608028654  # sqrt(2 / pi)


def _gelu_tanh(x):
    # PyTorch nn.GELU(approximate='tanh'):
    #   0.5 * x * (1 + tanh(sqrt(2/pi) * (x + 0.044715 * x^3)))
    # fused as x * (1 + 0.044715 * x^2) inside; tanh goes to the EUP slot.
    x2 = x * x
    inner = _SQRT_2_OVER_PI * x * (1.0 + 0.044715 * x2)
    return 0.5 * x * (1.0 + jnp.tanh(inner))


def _ffn_kernel(x_ref, w_fc_ref, b_fc_ref, w_proj_ref, b_proj_ref, o_ref, acc_ref):
    # grid = (M tiles, H tiles). H is the contraction axis of the second matmul:
    # accumulate into f32 scratch, finalize (add output bias, cast) on the last block.
    h_idx = pl.program_id(1)

    @pl.when(h_idx == 0)
    def _():
        acc_ref[...] = jnp.zeros_like(acc_ref)

    # First matmul: full-C contraction producing one H tile of the hidden (f32 acc).
    hidden = jnp.dot(x_ref[...], w_fc_ref[...], preferred_element_type=jnp.float32)
    hidden = _gelu_tanh(hidden + b_fc_ref[...])  # bias + GELU in f32

    # Second matmul: contract this H tile into the (tile_m, C) accumulator.
    acc_ref[...] += jnp.dot(hidden.astype(w_proj_ref.dtype), w_proj_ref[...],
                            preferred_element_type=jnp.float32)

    @pl.when(h_idx == pl.num_programs(1) - 1)
    def _():
        o_ref[...] = (acc_ref[...] + b_proj_ref[...]).astype(o_ref.dtype)


def _pick_tile_m(M, target=512):
    if M <= target:
        return M
    return max(8, (target // 8) * 8)


def _pick_tile_h(H, target=2048):
    if H <= target:
        return H
    # Largest multiple of 128 that divides H and is <= target (the last H block must
    # not contain out-of-bounds garbage, since it feeds the accumulator).
    start = (target // 128) * 128
    for cand in range(start, 127, -128):
        if H % cand == 0:
            return cand
    return H


def _vmem_bytes(tile_m, tile_h, C, in_bytes, out_bytes):
    x_tile = 2 * tile_m * C * in_bytes        # double-buffered input tile
    o_tile = 2 * tile_m * C * out_bytes       # double-buffered output tile
    w_fc = 2 * tile_h * C * in_bytes          # weight tiles (worst case 2-deep)
    w_proj = 2 * tile_h * C * in_bytes
    biases = 8 * (max(tile_h, 128) + max(C, 128)) * 4
    acc = tile_m * C * 4                      # f32 scratch accumulator
    hidden = tile_m * tile_h * 4              # live f32 intermediate
    return x_tile + o_tile + w_fc + w_proj + biases + acc + hidden


def _block_spec(shape, index_map, mode):
    if mode is None:
        return pl.BlockSpec(shape, index_map)
    return pl.BlockSpec(shape, index_map, pipeline_mode=mode)


def _build_call(M, C, H, tile_m, tile_h, out_dtype, vmem_limit, single_buffer_weights):
    if single_buffer_weights:
        # Weight blocks are constant along M (and along H too when tile_h == H):
        # no need for the default 2-deep buffering -> halves their VMEM footprint.
        w_mode = pl.Buffered(1) if tile_h == H else None
        const_mode = pl.Buffered(1)
    else:
        w_mode = None
        const_mode = None

    grid = (pl.cdiv(M, tile_m), pl.cdiv(H, tile_h))

    return pl.pallas_call(
        _ffn_kernel,
        out_shape=jax.ShapeDtypeStruct((M, C), out_dtype),
        grid_spec=pltpu.PrefetchScalarGridSpec(
            num_scalar_prefetch=0,
            grid=grid,
            in_specs=[
                _block_spec((tile_m, C), lambda i, h: (i, 0), None),      # x rows
                _block_spec((C, tile_h), lambda i, h: (0, h), w_mode),    # w_fc
                _block_spec((1, tile_h), lambda i, h: (0, h), w_mode),    # b_fc
                _block_spec((tile_h, C), lambda i, h: (h, 0), w_mode),    # w_proj
                _block_spec((1, C), lambda i, h: (0, 0), const_mode),     # b_proj
            ],
            out_specs=pl.BlockSpec((tile_m, C), lambda i, h: (i, 0)),
            scratch_shapes=[pltpu.VMEM((tile_m, C), jnp.float32)],
        ),
        compiler_params=pltpu.CompilerParams(
            dimension_semantics=("parallel", "arbitrary"),
            vmem_limit_bytes=vmem_limit,
        ),
    )


def feed_forward_net(x, w_fc, b_fc, w_proj, b_proj, *,
                     tile_m=None, tile_h=None, compute_dtype=jnp.bfloat16):
    """x: (B, T, C). Weights stored as (in_features, out_features). Returns (B, T, C)."""
    B, T, C = x.shape
    H = w_fc.shape[1]  # 4 * C
    M = B * T
    out_dtype = x.dtype

    # bf16 MXU inputs; f32 accumulation happens inside the kernel.
    x2d = x.reshape(M, C).astype(compute_dtype)
    w_fc_c = w_fc.astype(compute_dtype)
    w_proj_c = w_proj.astype(compute_dtype)
    b_fc2 = b_fc.reshape(1, H).astype(jnp.float32)
    b_proj2 = b_proj.reshape(1, C).astype(jnp.float32)

    in_bytes = jnp.dtype(compute_dtype).itemsize
    out_bytes = jnp.dtype(out_dtype).itemsize

    if tile_m is None:
        tile_m = _pick_tile_m(M)
    if tile_h is None:
        tile_h = _pick_tile_h(H)
    if tile_h != H:
        assert H % tile_h == 0, "hidden tile must divide the hidden dimension"
    if tile_m != M:
        assert tile_m % 8 == 0, "row tile must be a multiple of 8"

    # Shrink tiles until the working set fits a v7x-safe (~40 MiB) VMEM budget.
    budget = 40 * (1 << 20)
    while _vmem_bytes(tile_m, tile_h, C, in_bytes, out_bytes) > budget:
        if tile_h > 512 and tile_h % 256 == 0:
            tile_h //= 2
        elif tile_m > 128 and tile_m % 16 == 0:
            tile_m //= 2
        else:
            break

    est = _vmem_bytes(tile_m, tile_h, C, in_bytes, out_bytes)
    vmem_limit = int(min(max(2 * est, 32 * (1 << 20)), 64 * (1 << 20)))

    args = (x2d, w_fc_c, b_fc2, w_proj_c, b_proj2)
    try:
        out2d = _build_call(M, C, H, tile_m, tile_h, out_dtype, vmem_limit, True)(*args)
    except Exception:
        # Fallback if this Pallas build rejects pipeline_mode / Buffered(1).
        out2d = _build_call(M, C, H, tile_m, tile_h, out_dtype, vmem_limit, False)(*args)

    return out2d.reshape(B, T, C)
    # TODO(synk): if production C < 128, fold T into the lane dim (or pad C to 128)
    # to avoid masked vst.msk partial stores on the output.


def init_params(key, n_embed):
    """Deterministic init matching nn.Linear shapes (uniform +-1/sqrt(fan_in))."""
    hidden = 4 * n_embed
    k1, k2, k3, k4 = jax.random.split(key, 4)
    bound_fc = 1.0 / math.sqrt(n_embed)
    bound_proj = 1.0 / math.sqrt(hidden)
    # stored as (in_features, out_features): x @ W == x @ W_pt.T
    w_fc = jax.random.uniform(k1, (n_embed, hidden), jnp.float32, -bound_fc, bound_fc)
    b_fc = jax.random.uniform(k2, (hidden,), jnp.float32, -bound_fc, bound_fc)
    w_proj = jax.random.uniform(k3, (hidden, n_embed), jnp.float32, -bound_proj, bound_proj)
    b_proj = jax.random.uniform(k4, (n_embed,), jnp.float32, -bound_proj, bound_proj)
    return w_fc, b_fc, w_proj, b_proj


def feed_forward_ref(x, w_fc, b_fc, w_proj, b_proj, compute_dtype=None):
    """Pure-JAX reference. If compute_dtype is set, mirrors the kernel's bf16-in /
    f32-accumulate numerics for a tight comparison."""
    if compute_dtype is not None:
        x = x.astype(compute_dtype)
        w_fc = w_fc.astype(compute_dtype)
        w_proj = w_proj.astype(compute_dtype)
    h = jnp.dot(x, w_fc, preferred_element_type=jnp.float32) + b_fc
    h = _gelu_tanh(h)
    if compute_dtype is not None:
        h = h.astype(compute_dtype)
    return jnp.dot(h, w_proj, preferred_element_type=jnp.float32) + b_proj


def _check(B, T, C, key, **kw):
    k_params, k_x = jax.random.split(key)
    w_fc, b_fc, w_proj, b_proj = init_params(k_params, C)
    x = jax.random.normal(k_x, (B, T, C), jnp.float32)

    out = jax.block_until_ready(feed_forward_net(x, w_fc, b_fc, w_proj, b_proj, **kw))
    assert out.shape == (B, T, C)
    assert out.dtype == x.dtype

    ref_matched = feed_forward_ref(x, w_fc, b_fc, w_proj, b_proj, compute_dtype=jnp.bfloat16)
    ref_f32 = feed_forward_ref(x, w_fc, b_fc, w_proj, b_proj)
    assert jnp.allclose(out, ref_matched, atol=5e-3, rtol=5e-3), \
        "mismatch vs matched-precision reference"
    assert jnp.allclose(out, ref_f32, atol=5e-2, rtol=5e-2), \
        "mismatch vs f32 reference"


if __name__ == "__main__":
    key = jax.random.PRNGKey(0)
    k1, k2 = jax.random.split(key)

    # Shapes implied by the module (small GPT block): B=2, T=8, n_embed=32 -> hidden 128.
    _check(2, 8, 32, k1)

    # Slightly larger shape exercising the multi-block accumulator path:
    # M=256, H=512 with tile_m=128, tile_h=128 -> grid (2, 4).
    _check(2, 128, 128, k2, tile_m=128, tile_h=128)

    print("KERNEL_OK")
</pallas_src>

<mosaic_0001>
module attributes {stable_mosaic.version = 11 : i64} {
  func.func @_ffn_kernel(%arg0: i32, %arg1: i32, %arg2: memref<16x32xbf16, #tpu.memory_space<vmem>>, %arg3: memref<32x128xbf16, #tpu.memory_space<vmem>>, %arg4: memref<1x128xf32, #tpu.memory_space<vmem>>, %arg5: memref<128x32xbf16, #tpu.memory_space<vmem>>, %arg6: memref<1x32xf32, #tpu.memory_space<vmem>>, %arg7: memref<16x32xf32, #tpu.memory_space<vmem>>, %arg8: memref<16x32xf32, #tpu.memory_space<vmem>>) attributes {dimension_semantics = [#tpu.dimension_semantics<parallel>, #tpu.dimension_semantics<arbitrary>], iteration_bounds = array<i64: 1, 1>, scalar_prefetch = 0 : i64, scratch_operands = 1 : i64, tpu.core_type = #tpu.core_type<tc>, window_params = [{transform_indices = @transform_0, window_bounds = array<i64: 16, 32>}, {pipeline_mode = #tpu.pipeline_mode<synchronous>, transform_indices = @transform_1, window_bounds = array<i64: 32, 128>}, {pipeline_mode = #tpu.pipeline_mode<synchronous>, transform_indices = @transform_2, window_bounds = array<i64: 1, 128>}, {pipeline_mode = #tpu.pipeline_mode<synchronous>, transform_indices = @transform_3, window_bounds = array<i64: 128, 32>}, {pipeline_mode = #tpu.pipeline_mode<synchronous>, transform_indices = @transform_4, window_bounds = array<i64: 1, 32>}, {transform_indices = @transform_5, window_bounds = array<i64: 16, 32>}]} {
    %c0_i32 = arith.constant 0 : i32
    %0 = arith.cmpi eq, %arg1, %c0_i32 : i32
    %1 = arith.extui %0 : i1 to i32
    %c0_i32_0 = arith.constant 0 : i32
    %2 = arith.cmpi ne, %1, %c0_i32_0 : i32
    scf.if %2 {
      %cst_20 = arith.constant 0.000000e+00 : f32
      %32 = vector.broadcast %cst_20 : f32 to vector<16x32xf32>
      %c0_21 = arith.constant 0 : index
      %c0_22 = arith.constant 0 : index
      %33 = vector.load %arg8[%c0_21, %c0_22] : memref<16x32xf32, #tpu.memory_space<vmem>>, vector<16x32xf32>
      tpu.vector_store %arg8[%c0_21, %c0_22], %32 {strides = array<i32>} : memref<16x32xf32, #tpu.memory_space<vmem>>, vector<16x32xf32>,
    } else {
    }
    %c0 = arith.constant 0 : index
    %c0_1 = arith.constant 0 : index
    %3 = vector.load %arg2[%c0, %c0_1] : memref<16x32xbf16, #tpu.memory_space<vmem>>, vector<16x32xbf16>
    %c0_2 = arith.constant 0 : index
    %c0_3 = arith.constant 0 : index
    %4 = vector.load %arg3[%c0_2, %c0_3] : memref<32x128xbf16, #tpu.memory_space<vmem>>, vector<32x128xbf16>
    %cst = arith.constant dense<0.000000e+00> : vector<16x128xf32>
    %5 = tpu.matmul %3, %4, %cst {dimension_numbers = #tpu.dot_dimension_numbers<[1], [0], [0], [1], [0, 0, 1, 1], [], []>} : vector<16x32xbf16>, vector<32x128xbf16>, vector<16x128xf32> -> vector<16x128xf32>
    %c0_4 = arith.constant 0 : index
    %c0_5 = arith.constant 0 : index
    %6 = vector.load %arg4[%c0_4, %c0_5] : memref<1x128xf32, #tpu.memory_space<vmem>>, vector<1x128xf32>
    %7 = vector.broadcast %6 : vector<1x128xf32> to vector<16x128xf32>
    %8 = arith.addf %5, %7 : vector<16x128xf32>
    %9 = arith.mulf %8, %8 : vector<16x128xf32>
    %cst_6 = arith.constant 0.797884583 : f32
    %10 = vector.broadcast %cst_6 : f32 to vector<16x128xf32>
    %11 = arith.mulf %10, %8 : vector<16x128xf32>
    %cst_7 = arith.constant 4.471500e-02 : f32
    %12 = vector.broadcast %cst_7 : f32 to vector<16x128xf32>
    %13 = arith.mulf %12, %9 : vector<16x128xf32>
    %cst_8 = arith.constant 1.000000e+00 : f32
    %14 = vector.broadcast %cst_8 : f32 to vector<16x128xf32>
    %15 = arith.addf %14, %13 : vector<16x128xf32>
    %16 = arith.mulf %11, %15 : vector<16x128xf32>
    %cst_9 = arith.constant 5.000000e-01 : f32
    %17 = vector.broadcast %cst_9 : f32 to vector<16x128xf32>
    %18 = arith.mulf %17, %8 : vector<16x128xf32>
    %19 = math.tanh %16 : vector<16x128xf32>
    %cst_10 = arith.constant 1.000000e+00 : f32
    %20 = vector.broadcast %cst_10 : f32 to vector<16x128xf32>
    %21 = arith.addf %20, %19 : vector<16x128xf32>
    %22 = arith.mulf %18, %21 : vector<16x128xf32>
    %c0_11 = arith.constant 0 : index
    %c0_12 = arith.constant 0 : index
    %23 = vector.load %arg8[%c0_11, %c0_12] : memref<16x32xf32, #tpu.memory_space<vmem>>, vector<16x32xf32>
    %24 = arith.truncf %22 : vector<16x128xf32> to vector<16x128xbf16>
    %c0_13 = arith.constant 0 : index
    %c0_14 = arith.constant 0 : index
    %25 = vector.load %arg5[%c0_13, %c0_14] : memref<128x32xbf16, #tpu.memory_space<vmem>>, vector<128x32xbf16>
    %cst_15 = arith.constant dense<0.000000e+00> : vector<16x32xf32>
    %26 = tpu.matmul %24, %25, %cst_15 {dimension_numbers = #tpu.dot_dimension_numbers<[1], [0], [0], [1], [0, 0, 1, 1], [], []>} : vector<16x128xbf16>, vector<128x32xbf16>, vector<16x32xf32> -> vector<16x32xf32>
    %27 = arith.addf %23, %26 : vector<16x32xf32>
    %c0_16 = arith.constant 0 : index
    %c0_17 = arith.constant 0 : index
    %28 = vector.load %arg8[%c0_16, %c0_17] : memref<16x32xf32, #tpu.memory_space<vmem>>, vector<16x32xf32>
    tpu.vector_store %arg8[%c0_16, %c0_17], %27 {strides = array<i32>} : memref<16x32xf32, #tpu.memory_space<vmem>>, vector<16x32xf32>,
    %c0_i32_18 = arith.constant 0 : i32
    %29 = arith.cmpi eq, %arg1, %c0_i32_18 : i32
    %30 = arith.extui %29 : i1 to i32
    %c0_i32_19 = arith.constant 0 : i32
    %31 = arith.cmpi ne, %30, %c0_i32_19 : i32
    scf.if %31 {
      %c0_20 = arith.constant 0 : index
      %c0_21 = arith.constant 0 : index
      %32 = vector.load %arg8[%c0_20, %c0_21] : memref<16x32xf32, #tpu.memory_space<vmem>>, vector<16x32xf32>
      %c0_22 = arith.constant 0 : index
      %c0_23 = arith.constant 0 : index
      %33 = vector.load %arg6[%c0_22, %c0_23] : memref<1x32xf32, #tpu.memory_space<vmem>>, vector<1x32xf32>
      %34 = vector.broadcast %33 : vector<1x32xf32> to vector<16x32xf32>
      %35 = arith.addf %32, %34 : vector<16x32xf32>
      %c0_24 = arith.constant 0 : index
      %c0_25 = arith.constant 0 : index
      %36 = vector.load %arg7[%c0_24, %c0_25] : memref<16x32xf32, #tpu.memory_space<vmem>>, vector<16x32xf32>
      tpu.vector_store %arg7[%c0_24, %c0_25], %35 {strides = array<i32>} : memref<16x32xf32, #tpu.memory_space<vmem>>, vector<16x32xf32>,
    } else {
    }
    return
  }
  func.func @transform_0(%arg0: i32, %arg1: i32) -> (i32, i32) {
    %c0_i32 = arith.constant 0 : i32
    %c0_i32_0 = arith.constant 0 : i32
    return %arg0, %c0_i32 : i32, i32
  }
  func.func @transform_1(%arg0: i32, %arg1: i32) -> (i32, i32) {
    %c0_i32 = arith.constant 0 : i32
    %c0_i32_0 = arith.constant 0 : i32
    return %c0_i32, %arg1 : i32, i32
  }
  func.func @transform_2(%arg0: i32, %arg1: i32) -> (i32, i32) {
    %c0_i32 = arith.constant 0 : i32
    %c0_i32_0 = arith.constant 0 : i32
    return %c0_i32, %arg1 : i32, i32
  }
  func.func @transform_3(%arg0: i32, %arg1: i32) -> (i32, i32) {
    %c0_i32 = arith.constant 0 : i32
    %c0_i32_0 = arith.constant 0 : i32
    return %arg1, %c0_i32 : i32, i32
  }
  func.func @transform_4(%arg0: i32, %arg1: i32) -> (i32, i32) {
    %c0_i32 = arith.constant 0 : i32
    %c0_i32_0 = arith.constant 0 : i32
    %c0_i32_1 = arith.constant 0 : i32
    return %c0_i32, %c0_i32_0 : i32, i32
  }
  func.func @transform_5(%arg0: i32, %arg1: i32) -> (i32, i32) {
    %c0_i32 = arith.constant 0 : i32
    %c0_i32_0 = arith.constant 0 : i32
    return %arg0, %c0_i32 : i32, i32
  }
}

module attributes {stable_mosaic.version = 11 : i64} {
  func.func @_ffn_kernel(%arg0: i32, %arg1: i32, %arg2: memref<16x32xbf16, #tpu.memory_space<vmem>>, %arg3: memref<32x128xbf16, #tpu.memory_space<vmem>>, %arg4: memref<1x128xf32, #tpu.memory_space<vmem>>, %arg5: memref<128x32xbf16, #tpu.memory_space<vmem>>, %arg6: memref<1x32xf32, #tpu.memory_space<vmem>>, %arg7: memref<16x32xf32, #tpu.memory_space<vmem>>, %arg8: memref<16x32xf32, #tpu.memory_space<vmem>>) attributes {dimension_semantics = [#tpu.dimension_semantics<parallel>, #tpu.dimension_semantics<arbitrary>], iteration_bounds = array<i64: 1, 1>, scalar_prefetch = 0 : i64, scratch_operands = 1 : i64, tpu.core_type = #tpu.core_type<tc>, window_params = [{transform_indices = @transform_0, window_bounds = array<i64: 16, 32>}, {transform_indices = @transform_1, window_bounds = array<i64: 32, 128>}, {transform_indices = @transform_2, window_bounds = array<i64: 1, 128>}, {transform_indices = @transform_3, window_bounds = array<i64: 128, 32>}, {pipeline_mode = #tpu.pipeline_mode<synchronous>, transform_indices = @transform_4, window_bounds = array<i64: 1, 32>}, {transform_indices = @transform_5, window_bounds = array<i64: 16, 32>}]} {
    %c0_i32 = arith.constant 0 : i32
    %0 = arith.cmpi eq, %arg1, %c0_i32 : i32
    %1 = arith.extui %0 : i1 to i32
    %c0_i32_0 = arith.constant 0 : i32
    %2 = arith.cmpi ne, %1, %c0_i32_0 : i32
    scf.if %2 {
      %cst_20 = arith.constant 0.000000e+00 : f32
      %32 = vector.broadcast %cst_20 : f32 to vector<16x32xf32>
      %c0_21 = arith.constant 0 : index
      %c0_22 = arith.constant 0 : index
      %33 = vector.load %arg8[%c0_21, %c0_22] : memref<16x32xf32, #tpu.memory_space<vmem>>, vector<16x32xf32>
      tpu.vector_store %arg8[%c0_21, %c0_22], %32 {strides = array<i32>} : memref<16x32xf32, #tpu.memory_space<vmem>>, vector<16x32xf32>,
    } else {
    }
    %c0 = arith.constant 0 : index
    %c0_1 = arith.constant 0 : index
    %3 = vector.load %arg2[%c0, %c0_1] : memref<16x32xbf16, #tpu.memory_space<vmem>>, vector<16x32xbf16>
    %c0_2 = arith.constant 0 : index
    %c0_3 = arith.constant 0 : index
    %4 = vector.load %arg3[%c0_2, %c0_3] : memref<32x128xbf16, #tpu.memory_space<vmem>>, vector<32x128xbf16>
    %cst = arith.constant dense<0.000000e+00> : vector<16x128xf32>
    %5 = tpu.matmul %3, %4, %cst {dimension_numbers = #tpu.dot_dimension_numbers<[1], [0], [0], [1], [0, 0, 1, 1], [], []>} : vector<16x32xbf16>, vector<32x128xbf16>, vector<16x128xf32> -> vector<16x128xf32>
    %c0_4 = arith.constant 0 : index
    %c0_5 = arith.constant 0 : index
    %6 = vector.load %arg4[%c0_4, %c0_5] : memref<1x128xf32, #tpu.memory_space<vmem>>, vector<1x128xf32>
    %7 = vector.broadcast %6 : vector<1x128xf32> to vector<16x128xf32>
    %8 = arith.addf %5, %7 : vector<16x128xf32>
    %9 = arith.mulf %8, %8 : vector<16x128xf32>
    %cst_6 = arith.constant 0.797884583 : f32
    %10 = vector.broadcast %cst_6 : f32 to vector<16x128xf32>
    %11 = arith.mulf %10, %8 : vector<16x128xf32>
    %cst_7 = arith.constant 4.471500e-02 : f32
    %12 = vector.broadcast %cst_7 : f32 to vector<16x128xf32>
    %13 = arith.mulf %12, %9 : vector<16x128xf32>
    %cst_8 = arith.constant 1.000000e+00 : f32
    %14 = vector.broadcast %cst_8 : f32 to vector<16x128xf32>
    %15 = arith.addf %14, %13 : vector<16x128xf32>
    %16 = arith.mulf %11, %15 : vector<16x128xf32>
    %cst_9 = arith.constant 5.000000e-01 : f32
    %17 = vector.broadcast %cst_9 : f32 to vector<16x128xf32>
    %18 = arith.mulf %17, %8 : vector<16x128xf32>
    %19 = math.tanh %16 : vector<16x128xf32>
    %cst_10 = arith.constant 1.000000e+00 : f32
    %20 = vector.broadcast %cst_10 : f32 to vector<16x128xf32>
    %21 = arith.addf %20, %19 : vector<16x128xf32>
    %22 = arith.mulf %18, %21 : vector<16x128xf32>
    %c0_11 = arith.constant 0 : index
    %c0_12 = arith.constant 0 : index
    %23 = vector.load %arg8[%c0_11, %c0_12] : memref<16x32xf32, #tpu.memory_space<vmem>>, vector<16x32xf32>
    %24 = arith.truncf %22 : vector<16x128xf32> to vector<16x128xbf16>
    %c0_13 = arith.constant 0 : index
    %c0_14 = arith.constant 0 : index
    %25 = vector.load %arg5[%c0_13, %c0_14] : memref<128x32xbf16, #tpu.memory_space<vmem>>, vector<128x32xbf16>
    %cst_15 = arith.constant dense<0.000000e+00> : vector<16x32xf32>
    %26 = tpu.matmul %24, %25, %cst_15 {dimension_numbers = #tpu.dot_dimension_numbers<[1], [0], [0], [1], [0, 0, 1, 1], [], []>} : vector<16x128xbf16>, vector<128x32xbf16>, vector<16x32xf32> -> vector<16x32xf32>
    %27 = arith.addf %23, %26 : vector<16x32xf32>
    %c0_16 = arith.constant 0 : index
    %c0_17 = arith.constant 0 : index
    %28 = vector.load %arg8[%c0_16, %c0_17] : memref<16x32xf32, #tpu.memory_space<vmem>>, vector<16x32xf32>
    tpu.vector_store %arg8[%c0_16, %c0_17], %27 {strides = array<i32>} : memref<16x32xf32, #tpu.memory_space<vmem>>, vector<16x32xf32>,
    %c0_i32_18 = arith.constant 0 : i32
    %29 = arith.cmpi eq, %arg1, %c0_i32_18 : i32
    %30 = arith.extui %29 : i1 to i32
    %c0_i32_19 = arith.constant 0 : i32
    %31 = arith.cmpi ne, %30, %c0_i32_19 : i32
    scf.if %31 {
      %c0_20 = arith.constant 0 : index
      %c0_21 = arith.constant 0 : index
      %32 = vector.load %arg8[%c0_20, %c0_21] : memref<16x32xf32, #tpu.memory_space<vmem>>, vector<16x32xf32>
      %c0_22 = arith.constant 0 : index
      %c0_23 = arith.constant 0 : index
      %33 = vector.load %arg6[%c0_22, %c0_23] : memref<1x32xf32, #tpu.memory_space<vmem>>, vector<1x32xf32>
      %34 = vector.broadcast %33 : vector<1x32xf32> to vector<16x32xf32>
      %35 = arith.addf %32, %34 : vector<16x32xf32>
      %c0_24 = arith.constant 0 : index
      %c0_25 = arith.constant 0 : index
      %36 = vector.load %arg7[%c0_24, %c0_25] : memref<16x32xf32, #tpu.memory_space<vmem>>, vector<16x32xf32>
      tpu.vector_store %arg7[%c0_24, %c0_25], %35 {strides = array<i32>} : memref<16x32xf32, #tpu.memory_space<vmem>>, vector<16x32xf32>,
    } else {
    }
    return
  }
  func.func @transform_0(%arg0: i32, %arg1: i32) -> (i32, i32) {
    %c0_i32 = arith.constant 0 : i32
    %c0_i32_0 = arith.constant 0 : i32
    return %arg0, %c0_i32 : i32, i32
  }
  func.func @transform_1(%arg0: i32, %arg1: i32) -> (i32, i32) {
    %c0_i32 = arith.constant 0 : i32
    %c0_i32_0 = arith.constant 0 : i32
    return %c0_i32, %arg1 : i32, i32
  }
  func.func @transform_2(%arg0: i32, %arg1: i32) -> (i32, i32) {
    %c0_i32 = arith.constant 0 : i32
    %c0_i32_0 = arith.constant 0 : i32
    return %c0_i32, %arg1 : i32, i32
  }
  func.func @transform_3(%arg0: i32, %arg1: i32) -> (i32, i32) {
    %c0_i32 = arith.constant 0 : i32
    %c0_i32_0 = arith.constant 0 : i32
    return %arg1, %c0_i32 : i32, i32
  }
  func.func @transform_4(%arg0: i32, %arg1: i32) -> (i32, i32) {
    %c0_i32 = arith.constant 0 : i32
    %c0_i32_0 = arith.constant 0 : i32
    %c0_i32_1 = arith.constant 0 : i32
    return %c0_i32, %c0_i32_0 : i32, i32
  }
  func.func @transform_5(%arg0: i32, %arg1: i32) -> (i32, i32) {
    %c0_i32 = arith.constant 0 : i32
    %c0_i32_0 = arith.constant 0 : i32
    return %arg0, %c0_i32 : i32, i32
  }
}

</mosaic_0001>

<llo_original>
// kernel: tpu_custom_call.1
$region0: #{tpu_custom_call.1}
  #allocation0 [shape = 'u32[]', space=smem, size = 0x4, offset = 0x4, fixed_abs, tag = 'smem constant byte address 0x4 - core index']
  #allocation1 [shape = 'u32[144,128]{1,0:T(1,128)}', space=vmem, size = 0x12000, scoped, tag = 'internal scratch']
  #allocation2 [shape = 'f32[16,32]{1,0:T(8,128)}', space=vmem, size = 0x2000, scoped, tag = 'scratch operand']
  %s0 = inlined_call_operand.vmem [shape: bf16[16,32], index: 0, kind: input, shape index: {}]
  %s1 = inlined_call_operand.vmem [shape: bf16[32,128], index: 1, kind: input, shape index: {}]
  %s2 = inlined_call_operand.vmem [shape: f32[1,128], index: 2, kind: input, shape index: {}]
  %s3 = inlined_call_operand.vmem [shape: bf16[128,32], index: 3, kind: input, shape index: {}]
  %s4 = inlined_call_operand.vmem [shape: f32[1,32], index: 4, kind: input, shape index: {}]
  %s5 = inlined_call_operand.hbm [shape: f32[16,32], index: 5, kind: output, shape index: {}]
  %s6 = sld [smem:[#allocation0]]
  $region38: #{tpu_custom_call.1} parent=0
    _
  %s8 = ssub.s32 1, %s6
  %s9 = scalar_select 0, %s8, %s6
  $region1: #{tpu_custom_call.1} parent=0
    #allocation3 [shape = 'u8[8192]{0}', space=vmem, size = 0x2000, scoped, tag = 'output window, operand 0, single buffered']
    #allocation4 [shape = 's32[1]{0}', space=sflag, size = 0x4, scoped, tag = 'scoped memory for tpu_custom_call.1']
    %10 = vsyncpa [#allocation4], 0
    // Predicated region
    $region2: #{tpu_custom_call.1} parent=1 // pred_check
      _
    $region3: #{tpu_custom_call.1} parent=1 // pred_check_branch
      %12 = sbr.rel (0) target = $region5
    $region4: #{tpu_custom_call.1} parent=1 // pred_region
      _
    $region5: #{tpu_custom_call.1} parent=1 // pred_fallthru
      _
    // Predicated region
    $region6: #{tpu_custom_call.1} parent=1 // pred_check
      _
    $region7: #{tpu_custom_call.1} parent=1 // pred_check_branch
      %14 = sbr.rel (0) target = $region9
    $region8: #{tpu_custom_call.1} parent=1 // pred_region
      _
    $region9: #{tpu_custom_call.1} parent=1 // pred_fallthru
      _
    // Predicated region
    $region10: #{tpu_custom_call.1} parent=1 // pred_check
      _
    $region11: #{tpu_custom_call.1} parent=1 // pred_check_branch
      %16 = sbr.rel (0) target = $region13
    $region12: #{tpu_custom_call.1} parent=1 // pred_region
      _
    $region13: #{tpu_custom_call.1} parent=1 // pred_fallthru
      _
    // Predicated region
    $region14: #{tpu_custom_call.1} parent=1 // pred_check
      _
    $region15: #{tpu_custom_call.1} parent=1 // pred_check_branch
      %18 = sbr.rel (0) target = $region17
    $region16: #{tpu_custom_call.1} parent=1 // pred_region
      _
    $region17: #{tpu_custom_call.1} parent=1 // pred_fallthru
      _
    // Predicated region
    $region18: #{tpu_custom_call.1} parent=1 // pred_check
      _
    $region19: #{tpu_custom_call.1} parent=1 // pred_check_branch
      %20 = sbr.rel (0) target = $region21
    $region20: #{tpu_custom_call.1} parent=1 // pred_region
      _
    $region21: #{tpu_custom_call.1} parent=1 // pred_fallthru
      _
    %p22 = scmp.eq.s32.totalorder 0, 0
    // Predicated region
    $region22: #{tpu_custom_call.1} parent=1 // pred_check
      %p23 = pneg %p22
    $region23: #{tpu_custom_call.1} parent=1 // pred_check_branch
      %25 = sbr.rel (%p23) target = $region25
    $region24: #{tpu_custom_call.1} parent=1 // pred_region
      %vm26 = vcmask 261120
      %27 = vst.msk [vmem:[#allocation2] sm:$0xff] %vm26, 0.0
      %28 = vst.msk [vmem:[#allocation2 + $0x8] sm:$0xff] %vm26, 0.0
    $region25: #{tpu_custom_call.1} parent=1 // pred_fallthru
      _
    %v29 = vld [vmem:[%s0] sm:$0xf]
    %v30 = vld [vmem:[%s0 + $0x4] sm:$0xf]
    %v31 = vld [vmem:[%s1] sm:$0xf]
    %v32 = vld [vmem:[%s1 + $0x4] sm:$0xf]
    %v33 = vld [vmem:[%s1 + $0x8] sm:$0xf]
    %v34 = vld [vmem:[%s1 + $0xc] sm:$0xf]
    %v35 = vld [vmem:[%s2] sm:$0x1]
    %v37 = vlaneseq
    %v38 = vshrl.u32 %v37, 7
    %v39 = vsub.s32 0, %v38
    %v40 = vrot.slane %v35, %v39
    %v44 = vunpack.c.l.b16 %v29
    %v45 = vunpack.c.l.b16 %v30
    %v46 = vpack.c.b16 %v45, %v44
    %v51 = vunpack.c.l.b16 %v31
    %v52 = vunpack.c.l.b16 %v32
    %v53 = vunpack.c.l.b16 %v33
    %v54 = vunpack.c.l.b16 %v34
    %v55 = vpack.c.b16 %v52, %v51
    %v56 = vpack.c.b16 %v54, %v53
    %vm59 = vcmask 261120
    %v61 = vsel %vm59, %v46, 0
    %63 = vmatprep.subr.bf16.mxu0 0
    %64 = vmatpush1.bf16.msra.mxu0 %v55
    %65 = vmatprep.subr.bf16.mxu0 0
    %66 = vmatpush1.bf16.msra.mxu0 %v56
    %67 = vmatprep.subr.bf16.mxu0 0
    %68 = vmatpush1.bf16.msra.mxu0 0
    %69 = vmatprep.subr.bf16.mxu0 0
    %70 = vmatpush1.bf16.msra.mxu0 0
    %71 = vmatprep.subr.bf16.mxu0 0
    %72 = vmatpush1.bf16.msra.mxu0 0
    %73 = vmatprep.subr.bf16.mxu0 0
    %74 = vmatpush1.bf16.msra.mxu0 0
    %75 = vmatprep.subr.bf16.mxu0 0
    %76 = vmatpush1.bf16.msra.mxu0 0
    %77 = vmatprep.subr.bf16.mxu0 0
    %78 = vmatpush1.bf16.msra.mxu0 0
    %79 = vmatprep.subr.bf16.mxu0 0
    %80 = vmatpush1.bf16.msra.mxu0 0
    %81 = vmatprep.subr.bf16.mxu0 0
    %82 = vmatpush1.bf16.msra.mxu0 0
    %83 = vmatprep.subr.bf16.mxu0 0
    %84 = vmatpush1.bf16.msra.mxu0 0
    %85 = vmatprep.subr.bf16.mxu0 0
    %86 = vmatpush1.bf16.msra.mxu0 0
    %87 = vmatprep.subr.bf16.mxu0 0
    %88 = vmatpush1.bf16.msra.mxu0 0
    %89 = vmatprep.subr.bf16.mxu0 0
    %90 = vmatpush1.bf16.msra.mxu0 0
    %91 = vmatprep.subr.bf16.mxu0 0
    %92 = vmatpush1.bf16.msra.mxu0 0
    %93 = vmatprep.subr.bf16.mxu0 0
    %94 = vmatpush1.bf16.msra.mxu0 0
    %95 = vmatprep.mubr.bf16.mxu0 0
    %96 = vmatmul.mubr.bf16.gmra.mrb[0].mxu0 %v61
    %v97 = vpop.f32.mrb[0].mxu0
    %v98 = vadd.f32 %v40, %v97
    %v99 = vpop.f32.mrb[0].mxu0
    %v100 = vpop.f32.mrb[0].mxu0
    %v101 = vadd.f32 %v40, %v100
    %v102 = vpop.f32.mrb[0].mxu0
    %103 = vdwg.mxu0
    %v104 = vmul.f32 %v98, %v98
    %v105 = vmul.f32 %v101, %v101
    %v106 = vmul.f32 %v98, 0.7978846
    %v107 = vmul.f32 %v101, 0.7978846
    %v108 = vmul.f32 %v104, 0.044715
    %v109 = vmul.f32 %v105, 0.044715
    %v110 = vadd.f32 %v108, 1.0
    %v111 = vadd.f32 %v109, 1.0
    %v112 = vmul.f32 %v106, %v110
    %v113 = vmul.f32 %v107, %v111
    %v114 = vmul.f32 %v98, 0.5
    %v115 = vmul.f32 %v101, 0.5
    %v116 = vtanh.pop %v112
    %v117 = vtanh.pop %v113
    %v118 = vadd.f32 %v116, 1.0
    %v119 = vadd.f32 %v117, 1.0
    %v120 = vmul.f32 %v114, %v118
    %v121 = vmul.f32 %v115, %v119
    %v122 = vld [vmem:[#allocation2] sm:$0xff]
    %v123 = vld [vmem:[#allocation2 + $0x8] sm:$0xff]
    %v124 = vpack.c.bf16 %v121, %v120
    %v125 = vld [vmem:[%s3] sm:$0xf]
    %v126 = vld [vmem:[%s3 + $0x4] sm:$0xf]
    %v127 = vld [vmem:[%s3 + $0x8] sm:$0xf]
    %v128 = vld [vmem:[%s3 + $0xc] sm:$0xf]
    %v129 = vld [vmem:[%s3 + $0x10] sm:$0xf]
    %v130 = vld [vmem:[%s3 + $0x14] sm:$0xf]
    %v131 = vld [vmem:[%s3 + $0x18] sm:$0xf]
    %v132 = vld [vmem:[%s3 + $0x1c] sm:$0xf]
    %v133 = vld [vmem:[%s3 + $0x20] sm:$0xf]
    %v134 = vld [vmem:[%s3 + $0x24] sm:$0xf]
    %v135 = vld [vmem:[%s3 + $0x28] sm:$0xf]
    %v136 = vld [vmem:[%s3 + $0x2c] sm:$0xf]
    %v137 = vld [vmem:[%s3 + $0x30] sm:$0xf]
    %v138 = vld [vmem:[%s3 + $0x34] sm:$0xf]
    %v139 = vld [vmem:[%s3 + $0x38] sm:$0xf]
    %v140 = vld [vmem:[%s3 + $0x3c] sm:$0xf]
    %v157 = vunpack.c.l.b16 %v125
    %v158 = vunpack.c.l.b16 %v126
    %v159 = vunpack.c.l.b16 %v127
    %v160 = vunpack.c.l.b16 %v128
    %v161 = vunpack.c.l.b16 %v129
    %v162 = vunpack.c.l.b16 %v130
    %v163 = vunpack.c.l.b16 %v131
    %v164 = vunpack.c.l.b16 %v132
    %v165 = vunpack.c.l.b16 %v133
    %v166 = vunpack.c.l.b16 %v134
    %v167 = vunpack.c.l.b16 %v135
    %v168 = vunpack.c.l.b16 %v136
    %v169 = vunpack.c.l.b16 %v137
    %v170 = vunpack.c.l.b16 %v138
    %v171 = vunpack.c.l.b16 %v139
    %v172 = vunpack.c.l.b16 %v140
    %v173 = vpack.c.b16 %v158, %v157
    %v174 = vpack.c.b16 %v160, %v159
    %v175 = vpack.c.b16 %v162, %v161
    %v176 = vpack.c.b16 %v164, %v163
    %v177 = vpack.c.b16 %v166, %v165
    %v178 = vpack.c.b16 %v168, %v167
    %v179 = vpack.c.b16 %v170, %v169
    %v180 = vpack.c.b16 %v172, %v171
    %189 = vmatprep.subr.bf16.mxu0 0
    %190 = vmatpush1.bf16.msra.mxu0 %v173
    %191 = vmatprep.subr.bf16.mxu0 0
    %192 = vmatpush1.bf16.msra.mxu0 %v174
    %193 = vmatprep.subr.bf16.mxu0 0
    %194 = vmatpush1.bf16.msra.mxu0 %v175
    %195 = vmatprep.subr.bf16.mxu0 0
    %196 = vmatpush1.bf16.msra.mxu0 %v176
    %197 = vmatprep.subr.bf16.mxu0 0
    %198 = vmatpush1.bf16.msra.mxu0 %v177
    %199 = vmatprep.subr.bf16.mxu0 0
    %200 = vmatpush1.bf16.msra.mxu0 %v178
    %201 = vmatprep.subr.bf16.mxu0 0
    %202 = vmatpush1.bf16.msra.mxu0 %v179
    %203 = vmatprep.subr.bf16.mxu0 0
    %204 = vmatpush1.bf16.msra.mxu0 %v180
    %205 = vmatprep.subr.bf16.mxu0 0
    %206 = vmatpush1.bf16.msra.mxu0 0
    %207 = vmatprep.subr.bf16.mxu0 0
    %208 = vmatpush1.bf16.msra.mxu0 0
    %209 = vmatprep.subr.bf16.mxu0 0
    %210 = vmatpush1.bf16.msra.mxu0 0
    %211 = vmatprep.subr.bf16.mxu0 0
    %212 = vmatpush1.bf16.msra.mxu0 0
    %213 = vmatprep.subr.bf16.mxu0 0
    %214 = vmatpush1.bf16.msra.mxu0 0
    %215 = vmatprep.subr.bf16.mxu0 0
    %216 = vmatpush1.bf16.msra.mxu0 0
    %217 = vmatprep.subr.bf16.mxu0 0
    %218 = vmatpush1.bf16.msra.mxu0 0
    %219 = vmatprep.subr.bf16.mxu0 0
    %220 = vmatpush1.bf16.msra.mxu0 0
    %221 = vmatprep.mubr.bf16.mxu0 0
    %222 = vmatmul.mubr.bf16.gmra.mrb[0].mxu0 %v124
    %v223 = vpop.f32.mrb[0].mxu0
    %v224 = vadd.f32 0.0, %v223
    %v225 = vpop.f32.mrb[0].mxu0
    %v226 = vpop.f32.mrb[0].mxu0
    %v227 = vadd.f32 0.0, %v226
    %v228 = vpop.f32.mrb[0].mxu0
    %229 = vdwg.mxu0
    %v230 = vadd.f32 %v122, %v224
    %v231 = vadd.f32 %v123, %v227
    %232 = vst.msk [vmem:[#allocation2] sm:$0xff] %vm59, %v230
    %233 = vst.msk [vmem:[#allocation2 + $0x8] sm:$0xff] %vm59, %v231
    // Predicated region
    $region26: #{tpu_custom_call.1} parent=1 // pred_check
      %p234 = pneg %p22
    $region27: #{tpu_custom_call.1} parent=1 // pred_check_branch
      %236 = sbr.rel (%p234) target = $region29
    $region28: #{tpu_custom_call.1} parent=1 // pred_region
      %v237 = vld [vmem:[#allocation2] sm:$0xff]
      %v238 = vld [vmem:[#allocation2 + $0x8] sm:$0xff]
      %v239 = vld [vmem:[%s4] sm:$0x1]
      %v241 = vlaneseq
      %v242 = vshrl.u32 %v241, 7
      %v243 = vsub.s32 0, %v242
      %v244 = vrot.slane %v239, %v243
      %v246 = vadd.f32 %v237, %v244
      %v247 = vadd.f32 %v238, %v244
      %248 = vst.msk [vmem:[#allocation3] sm:$0xff] %vm59, %v246
      %249 = vst.msk [vmem:[#allocation3 + $0x8] sm:$0xff] %vm59, %v247
    $region29: #{tpu_custom_call.1} parent=1 // pred_fallthru
      _
    // Predicated region
    $region30: #{tpu_custom_call.1} parent=1 // pred_check
      _
    $region31: #{tpu_custom_call.1} parent=1 // pred_check_branch
      %251 = sbr.rel (0) target = $region33
    $region32: #{tpu_custom_call.1} parent=1 // pred_region
      %s253 = ssub.s32 256, 256
      %254 = vsyncadd [#allocation4], %s253
      %s255 = sshll.u32 [#allocation3], 4
      %s256 = int_to_ptr.vmem [resolvable:$true] %s255
      %261 = dma.vmem_to_hbm [thread:$0]  %s256, 256, %s5, [#allocation4], 128, 128, 8
    $region33: #{tpu_custom_call.1} parent=1 // pred_fallthru
      _
    // Predicated region
    $region34: #{tpu_custom_call.1} parent=1 // pred_check
      _
    $region35: #{tpu_custom_call.1} parent=1 // pred_check_branch
      %263 = sbr.rel (0) target = $region37
    $region36: #{tpu_custom_call.1} parent=1 // pred_region
      %264 = dma.done [#allocation4], 256
    $region37: #{tpu_custom_call.1} parent=1 // pred_fallthru
      _
    %265 = vsyncpa [#allocation4], 1

// kernel: tpu_custom_call.1
$region0: #{tpu_custom_call.1}
  #allocation0 [shape = 'u32[]', space=smem, size = 0x4, offset = 0x4, fixed_abs, tag = 'smem constant byte address 0x4 - core index']
  #allocation1 [shape = 'u32[144,128]{1,0:T(1,128)}', space=vmem, size = 0x12000, scoped, tag = 'internal scratch']
  #allocation2 [shape = 'f32[16,32]{1,0:T(8,128)}', space=vmem, size = 0x2000, scoped, tag = 'scratch operand']
  %s0 = inlined_call_operand.vmem [shape: bf16[16,32], index: 0, kind: input, shape index: {}]
  %s1 = inlined_call_operand.vmem [shape: bf16[32,128], index: 1, kind: input, shape index: {}]
  %s2 = inlined_call_operand.vmem [shape: f32[1,128], index: 2, kind: input, shape index: {}]
  %s3 = inlined_call_operand.vmem [shape: bf16[128,32], index: 3, kind: input, shape index: {}]
  %s4 = inlined_call_operand.vmem [shape: f32[1,32], index: 4, kind: input, shape index: {}]
  %s5 = inlined_call_operand.hbm [shape: f32[16,32], index: 5, kind: output, shape index: {}]
  %s6 = sld [smem:[#allocation0]]
  $region38: #{tpu_custom_call.1} parent=0
    _
  %s8 = ssub.s32 1, %s6
  %s9 = scalar_select 0, %s8, %s6
  $region1: #{tpu_custom_call.1} parent=0
    #allocation3 [shape = 'u8[8192]{0}', space=vmem, size = 0x2000, scoped, tag = 'output window, operand 0, single buffered']
    #allocation4 [shape = 's32[1]{0}', space=sflag, size = 0x4, scoped, tag = 'scoped memory for tpu_custom_call.1']
    %10 = vsyncpa [#allocation4], 0
    // Predicated region
    $region2: #{tpu_custom_call.1} parent=1 // pred_check
      _
    $region3: #{tpu_custom_call.1} parent=1 // pred_check_branch
      %12 = sbr.rel (0) target = $region5
    $region4: #{tpu_custom_call.1} parent=1 // pred_region
      _
    $region5: #{tpu_custom_call.1} parent=1 // pred_fallthru
      _
    // Predicated region
    $region6: #{tpu_custom_call.1} parent=1 // pred_check
      _
    $region7: #{tpu_custom_call.1} parent=1 // pred_check_branch
      %14 = sbr.rel (0) target = $region9
    $region8: #{tpu_custom_call.1} parent=1 // pred_region
      _
    $region9: #{tpu_custom_call.1} parent=1 // pred_fallthru
      _
    // Predicated region
    $region10: #{tpu_custom_call.1} parent=1 // pred_check
      _
    $region11: #{tpu_custom_call.1} parent=1 // pred_check_branch
      %16 = sbr.rel (0) target = $region13
    $region12: #{tpu_custom_call.1} parent=1 // pred_region
      _
    $region13: #{tpu_custom_call.1} parent=1 // pred_fallthru
      _
    // Predicated region
    $region14: #{tpu_custom_call.1} parent=1 // pred_check
      _
    $region15: #{tpu_custom_call.1} parent=1 // pred_check_branch
      %18 = sbr.rel (0) target = $region17
    $region16: #{tpu_custom_call.1} parent=1 // pred_region
      _
    $region17: #{tpu_custom_call.1} parent=1 // pred_fallthru
      _
    // Predicated region
    $region18: #{tpu_custom_call.1} parent=1 // pred_check
      _
    $region19: #{tpu_custom_call.1} parent=1 // pred_check_branch
      %20 = sbr.rel (0) target = $region21
    $region20: #{tpu_custom_call.1} parent=1 // pred_region
      _
    $region21: #{tpu_custom_call.1} parent=1 // pred_fallthru
      _
    %p22 = scmp.eq.s32.totalorder 0, 0
    // Predicated region
    $region22: #{tpu_custom_call.1} parent=1 // pred_check
      %p23 = pneg %p22
    $region23: #{tpu_custom_call.1} parent=1 // pred_check_branch
      %25 = sbr.rel (%p23) target = $region25
    $region24: #{tpu_custom_call.1} parent=1 // pred_region
      %vm26 = vcmask 261120
      %27 = vst.msk [vmem:[#allocation2] sm:$0xff] %vm26, 0.0
      %28 = vst.msk [vmem:[#allocation2 + $0x8] sm:$0xff] %vm26, 0.0
    $region25: #{tpu_custom_call.1} parent=1 // pred_fallthru
      _
    %v29 = vld [vmem:[%s0] sm:$0xf]
    %v30 = vld [vmem:[%s0 + $0x4] sm:$0xf]
    %v31 = vld [vmem:[%s1] sm:$0xf]
    %v32 = vld [vmem:[%s1 + $0x4] sm:$0xf]
    %v33 = vld [vmem:[%s1 + $0x8] sm:$0xf]
    %v34 = vld [vmem:[%s1 + $0xc] sm:$0xf]
    %v35 = vld [vmem:[%s2] sm:$0x1]
    %v37 = vlaneseq
    %v38 = vshrl.u32 %v37, 7
    %v39 = vsub.s32 0, %v38
    %v40 = vrot.slane %v35, %v39
    %v44 = vunpack.c.l.b16 %v29
    %v45 = vunpack.c.l.b16 %v30
    %v46 = vpack.c.b16 %v45, %v44
    %v51 = vunpack.c.l.b16 %v31
    %v52 = vunpack.c.l.b16 %v32
    %v53 = vunpack.c.l.b16 %v33
    %v54 = vunpack.c.l.b16 %v34
    %v55 = vpack.c.b16 %v52, %v51
    %v56 = vpack.c.b16 %v54, %v53
    %vm59 = vcmask 261120
    %v61 = vsel %vm59, %v46, 0
    %63 = vmatprep.subr.bf16.mxu0 0
    %64 = vmatpush1.bf16.msra.mxu0 %v55
    %65 = vmatprep.subr.bf16.mxu0 0
    %66 = vmatpush1.bf16.msra.mxu0 %v56
    %67 = vmatprep.subr.bf16.mxu0 0
    %68 = vmatpush1.bf16.msra.mxu0 0
    %69 = vmatprep.subr.bf16.mxu0 0
    %70 = vmatpush1.bf16.msra.mxu0 0
    %71 = vmatprep.subr.bf16.mxu0 0
    %72 = vmatpush1.bf16.msra.mxu0 0
    %73 = vmatprep.subr.bf16.mxu0 0
    %74 = vmatpush1.bf16.msra.mxu0 0
    %75 = vmatprep.subr.bf16.mxu0 0
    %76 = vmatpush1.bf16.msra.mxu0 0
    %77 = vmatprep.subr.bf16.mxu0 0
    %78 = vmatpush1.bf16.msra.mxu0 0
    %79 = vmatprep.subr.bf16.mxu0 0
    %80 = vmatpush1.bf16.msra.mxu0 0
    %81 = vmatprep.subr.bf16.mxu0 0
    %82 = vmatpush1.bf16.msra.mxu0 0
    %83 = vmatprep.subr.bf16.mxu0 0
    %84 = vmatpush1.bf16.msra.mxu0 0
    %85 = vmatprep.subr.bf16.mxu0 0
    %86 = vmatpush1.bf16.msra.mxu0 0
    %87 = vmatprep.subr.bf16.mxu0 0
    %88 = vmatpush1.bf16.msra.mxu0 0
    %89 = vmatprep.subr.bf16.mxu0 0
    %90 = vmatpush1.bf16.msra.mxu0 0
    %91 = vmatprep.subr.bf16.mxu0 0
    %92 = vmatpush1.bf16.msra.mxu0 0
    %93 = vmatprep.subr.bf16.mxu0 0
    %94 = vmatpush1.bf16.msra.mxu0 0
    %95 = vmatprep.mubr.bf16.mxu0 0
    %96 = vmatmul.mubr.bf16.gmra.mrb[0].mxu0 %v61
    %v97 = vpop.f32.mrb[0].mxu0
    %v98 = vadd.f32 %v40, %v97
    %v99 = vpop.f32.mrb[0].mxu0
    %v100 = vpop.f32.mrb[0].mxu0
    %v101 = vadd.f32 %v40, %v100
    %v102 = vpop.f32.mrb[0].mxu0
    %103 = vdwg.mxu0
    %v104 = vmul.f32 %v98, %v98
    %v105 = vmul.f32 %v101, %v101
    %v106 = vmul.f32 %v98, 0.7978846
    %v107 = vmul.f32 %v101, 0.7978846
    %v108 = vmul.f32 %v104, 0.044715
    %v109 = vmul.f32 %v105, 0.044715
    %v110 = vadd.f32 %v108, 1.0
    %v111 = vadd.f32 %v109, 1.0
    %v112 = vmul.f32 %v106, %v110
    %v113 = vmul.f32 %v107, %v111
    %v114 = vmul.f32 %v98, 0.5
    %v115 = vmul.f32 %v101, 0.5
    %v116 = vtanh.pop %v112
    %v117 = vtanh.pop %v113
    %v118 = vadd.f32 %v116, 1.0
    %v119 = vadd.f32 %v117, 1.0
    %v120 = vmul.f32 %v114, %v118
    %v121 = vmul.f32 %v115, %v119
    %v122 = vld [vmem:[#allocation2] sm:$0xff]
    %v123 = vld [vmem:[#allocation2 + $0x8] sm:$0xff]
    %v124 = vpack.c.bf16 %v121, %v120
    %v125 = vld [vmem:[%s3] sm:$0xf]
    %v126 = vld [vmem:[%s3 + $0x4] sm:$0xf]
    %v127 = vld [vmem:[%s3 + $0x8] sm:$0xf]
    %v128 = vld [vmem:[%s3 + $0xc] sm:$0xf]
    %v129 = vld [vmem:[%s3 + $0x10] sm:$0xf]
    %v130 = vld [vmem:[%s3 + $0x14] sm:$0xf]
    %v131 = vld [vmem:[%s3 + $0x18] sm:$0xf]
    %v132 = vld [vmem:[%s3 + $0x1c] sm:$0xf]
    %v133 = vld [vmem:[%s3 + $0x20] sm:$0xf]
    %v134 = vld [vmem:[%s3 + $0x24] sm:$0xf]
    %v135 = vld [vmem:[%s3 + $0x28] sm:$0xf]
    %v136 = vld [vmem:[%s3 + $0x2c] sm:$0xf]
    %v137 = vld [vmem:[%s3 + $0x30] sm:$0xf]
    %v138 = vld [vmem:[%s3 + $0x34] sm:$0xf]
    %v139 = vld [vmem:[%s3 + $0x38] sm:$0xf]
    %v140 = vld [vmem:[%s3 + $0x3c] sm:$0xf]
    %v157 = vunpack.c.l.b16 %v125
    %v158 = vunpack.c.l.b16 %v126
    %v159 = vunpack.c.l.b16 %v127
    %v160 = vunpack.c.l.b16 %v128
    %v161 = vunpack.c.l.b16 %v129
    %v162 = vunpack.c.l.b16 %v130
    %v163 = vunpack.c.l.b16 %v131
    %v164 = vunpack.c.l.b16 %v132
    %v165 = vunpack.c.l.b16 %v133
    %v166 = vunpack.c.l.b16 %v134
    %v167 = vunpack.c.l.b16 %v135
    %v168 = vunpack.c.l.b16 %v136
    %v169 = vunpack.c.l.b16 %v137
    %v170 = vunpack.c.l.b16 %v138
    %v171 = vunpack.c.l.b16 %v139
    %v172 = vunpack.c.l.b16 %v140
    %v173 = vpack.c.b16 %v158, %v157
    %v174 = vpack.c.b16 %v160, %v159
    %v175 = vpack.c.b16 %v162, %v161
    %v176 = vpack.c.b16 %v164, %v163
    %v177 = vpack.c.b16 %v166, %v165
    %v178 = vpack.c.b16 %v168, %v167
    %v179 = vpack.c.b16 %v170, %v169
    %v180 = vpack.c.b16 %v172, %v171
    %189 = vmatprep.subr.bf16.mxu0 0
    %190 = vmatpush1.bf16.msra.mxu0 %v173
    %191 = vmatprep.subr.bf16.mxu0 0
    %192 = vmatpush1.bf16.msra.mxu0 %v174
    %193 = vmatprep.subr.bf16.mxu0 0
    %194 = vmatpush1.bf16.msra.mxu0 %v175
    %195 = vmatprep.subr.bf16.mxu0 0
    %196 = vmatpush1.bf16.msra.mxu0 %v176
    %197 = vmatprep.subr.bf16.mxu0 0
    %198 = vmatpush1.bf16.msra.mxu0 %v177
    %199 = vmatprep.subr.bf16.mxu0 0
    %200 = vmatpush1.bf16.msra.mxu0 %v178
    %201 = vmatprep.subr.bf16.mxu0 0
    %202 = vmatpush1.bf16.msra.mxu0 %v179
    %203 = vmatprep.subr.bf16.mxu0 0
    %204 = vmatpush1.bf16.msra.mxu0 %v180
    %205 = vmatprep.subr.bf16.mxu0 0
    %206 = vmatpush1.bf16.msra.mxu0 0
    %207 = vmatprep.subr.bf16.mxu0 0
    %208 = vmatpush1.bf16.msra.mxu0 0
    %209 = vmatprep.subr.bf16.mxu0 0
    %210 = vmatpush1.bf16.msra.mxu0 0
    %211 = vmatprep.subr.bf16.mxu0 0
    %212 = vmatpush1.bf16.msra.mxu0 0
    %213 = vmatprep.subr.bf16.mxu0 0
    %214 = vmatpush1.bf16.msra.mxu0 0
    %215 = vmatprep.subr.bf16.mxu0 0
    %216 = vmatpush1.bf16.msra.mxu0 0
    %217 = vmatprep.subr.bf16.mxu0 0
    %218 = vmatpush1.bf16.msra.mxu0 0
    %219 = vmatprep.subr.bf16.mxu0 0
    %220 = vmatpush1.bf16.msra.mxu0 0
    %221 = vmatprep.mubr.bf16.mxu0 0
    %222 = vmatmul.mubr.bf16.gmra.mrb[0].mxu0 %v124
    %v223 = vpop.f32.mrb[0].mxu0
    %v224 = vadd.f32 0.0, %v223
    %v225 = vpop.f32.mrb[0].mxu0
    %v226 = vpop.f32.mrb[0].mxu0
    %v227 = vadd.f32 0.0, %v226
    %v228 = vpop.f32.mrb[0].mxu0
    %229 = vdwg.mxu0
    %v230 = vadd.f32 %v122, %v224
    %v231 = vadd.f32 %v123, %v227
    %232 = vst.msk [vmem:[#allocation2] sm:$0xff] %vm59, %v230
    %233 = vst.msk [vmem:[#allocation2 + $0x8] sm:$0xff] %vm59, %v231
    // Predicated region
    $region26: #{tpu_custom_call.1} parent=1 // pred_check
      %p234 = pneg %p22
    $region27: #{tpu_custom_call.1} parent=1 // pred_check_branch
      %236 = sbr.rel (%p234) target = $region29
    $region28: #{tpu_custom_call.1} parent=1 // pred_region
      %v237 = vld [vmem:[#allocation2] sm:$0xff]
      %v238 = vld [vmem:[#allocation2 + $0x8] sm:$0xff]
      %v239 = vld [vmem:[%s4] sm:$0x1]
      %v241 = vlaneseq
      %v242 = vshrl.u32 %v241, 7
      %v243 = vsub.s32 0, %v242
      %v244 = vrot.slane %v239, %v243
      %v246 = vadd.f32 %v237, %v244
      %v247 = vadd.f32 %v238, %v244
      %248 = vst.msk [vmem:[#allocation3] sm:$0xff] %vm59, %v246
      %249 = vst.msk [vmem:[#allocation3 + $0x8] sm:$0xff] %vm59, %v247
    $region29: #{tpu_custom_call.1} parent=1 // pred_fallthru
      _
    // Predicated region
    $region30: #{tpu_custom_call.1} parent=1 // pred_check
      _
    $region31: #{tpu_custom_call.1} parent=1 // pred_check_branch
      %251 = sbr.rel (0) target = $region33
    $region32: #{tpu_custom_call.1} parent=1 // pred_region
      %s253 = ssub.s32 256, 256
      %254 = vsyncadd [#allocation4], %s253
      %s255 = sshll.u32 [#allocation3], 4
      %s256 = int_to_ptr.vmem [resolvable:$true] %s255
      %261 = dma.vmem_to_hbm [thread:$0]  %s256, 256, %s5, [#allocation4], 128, 128, 8
    $region33: #{tpu_custom_call.1} parent=1 // pred_fallthru
      _
    // Predicated region
    $region34: #{tpu_custom_call.1} parent=1 // pred_check
      _
    $region35: #{tpu_custom_call.1} parent=1 // pred_check_branch
      %263 = sbr.rel (0) target = $region37
    $region36: #{tpu_custom_call.1} parent=1 // pred_region
      %264 = dma.done [#allocation4], 256
    $region37: #{tpu_custom_call.1} parent=1 // pred_fallthru
      _
    %265 = vsyncpa [#allocation4], 1

</llo_original>
